<compile_context>
chip_gen: v7x
topology: tpu7x:2x2x1
jax: 0.10.0
libtpu: 0.0.40
codegen_flags: <defaults>
</compile_context>

<pallas_src>
import jax
import jax.numpy as jnp
from jax.experimental import pallas as pl
from jax.experimental.pallas import tpu as pltpu


def _conv1d_mxu_kernel(xs_ref, w_ref, b_ref, o_ref):
    # xs_ref: (N, KP, L) bf16  -- wrapper-built im2col patches (taps, zero-padded
    #                             from K=11 up to KP=16 sublanes)
    # w_ref : (C, KP)    bf16  -- conv taps, zero-padded to KP columns
    # b_ref : (C, 1)     f32   -- bias (kept in f32; added post-matmul)
    # o_ref : (N, C, L)  f32   -- output directly in PyTorch NCL layout
    w = w_ref[...]
    b = b_ref[...]
    n_batch = xs_ref.shape[0]
    for n in range(n_batch):            # N is tiny (2); static unrolled loop
        o_ref[n] = jnp.dot(w, xs_ref[n], preferred_element_type=jnp.float32) + b


@jax.jit
def conv1d_same_pallas(x, kernel_weights, bias):
    """Equivalent of CNN_Model.forward.

    x              : (N, 1, L)  float32
    kernel_weights : (C, 1, K)  float32  (K odd, 'same' padding = (K-1)//2)
    bias           : (C,)       float32
    returns        : (N, C, L)  float32
    """
    N, _, L = x.shape
    C, _, K = kernel_weights.shape
    pad = (K - 1) // 2
    KP = ((K + 15) // 16) * 16          # pad contraction depth to a bf16 sublane tile

    # --- im2col in the wrapper (cheap XLA slices; xs is ~8 KiB at this size) ---
    xp = jnp.pad(x[:, 0, :].astype(jnp.float32), ((0, 0), (pad, pad)))       # (N, L+2p)
    xs = jnp.stack([xp[:, k:k + L] for k in range(K)], axis=1)               # (N, K, L)
    xs = jnp.pad(xs, ((0, 0), (0, KP - K), (0, 0))).astype(jnp.bfloat16)     # (N, KP, L)

    # Weights: (C, K) -> zero-pad to (C, KP), cast to bf16 for the MXU.
    w = jnp.pad(kernel_weights[:, 0, :].astype(jnp.float32),
                ((0, 0), (0, KP - K))).astype(jnp.bfloat16)                  # (C, KP)
    b = bias.reshape(C, 1).astype(jnp.float32)                               # (C, 1)

    # Gridless call: whole problem (<300 KiB of operands) lives in VMEM; the
    # kernel is a couple of 16-deep MXU dots + an f32 bias add.
    return pl.pallas_call(
        _conv1d_mxu_kernel,
        out_shape=jax.ShapeDtypeStruct((N, C, L), jnp.float32),
        in_specs=[
            pl.BlockSpec(memory_space=pltpu.MemorySpace.VMEM),   # xs
            pl.BlockSpec(memory_space=pltpu.MemorySpace.VMEM),   # weights
            pl.BlockSpec(memory_space=pltpu.MemorySpace.VMEM),   # bias
        ],
        out_specs=pl.BlockSpec(memory_space=pltpu.MemorySpace.VMEM),
    )(xs, w, b)


if __name__ == "__main__":
    # Small shapes consistent with the module: Conv1d(1 -> 272, k=11, pad=5).
    N, L = 2, 128
    C, K = 272, 11
    pad = (K - 1) // 2

    key = jax.random.PRNGKey(0)
    kx, kw, kb = jax.random.split(key, 3)
    x = jax.random.normal(kx, (N, 1, L), dtype=jnp.float32)
    kernel_weights = 0.1 * jax.random.normal(kw, (C, 1, K), dtype=jnp.float32)
    bias_zero = jnp.zeros((C,), dtype=jnp.float32)   # reset_parameters(): bias = 0
    bias_rand = 0.5 * jax.random.normal(kb, (C,), dtype=jnp.float32)  # trained bias case

    def ref_conv(xq, wq, b):
        return jax.lax.conv_general_dilated(
            xq, wq, window_strides=(1,), padding=[(pad, pad)],
            dimension_numbers=("NCH", "OIH", "NCH"),
            precision=jax.lax.Precision.HIGHEST) + b[None, :, None]

    # bf16-rounded-operand reference (matches the MXU bf16 x bf16 -> f32 path).
    xq = x.astype(jnp.bfloat16).astype(jnp.float32)
    wq = kernel_weights.astype(jnp.bfloat16).astype(jnp.float32)

    # --- zero bias (the module's initial state) ---
    y = jax.block_until_ready(conv1d_same_pallas(x, kernel_weights, bias_zero))
    assert y.shape == (N, C, L), y.shape
    assert jnp.allclose(y, ref_conv(xq, wq, bias_zero), atol=1e-4, rtol=1e-4), \
        "mismatch vs bf16-operand reference conv (zero bias)"
    assert jnp.allclose(y, ref_conv(x, kernel_weights, bias_zero),
                        atol=2e-2, rtol=2e-2), \
        "mismatch vs f32 reference conv (zero bias)"

    # --- nonzero bias (bias is trainable in the module); bias stays exact f32 ---
    y2 = jax.block_until_ready(conv1d_same_pallas(x, kernel_weights, bias_rand))
    assert jnp.allclose(y2, ref_conv(xq, wq, bias_rand), atol=1e-4, rtol=1e-4), \
        "mismatch vs bf16-operand reference conv (nonzero bias)"

    print("KERNEL_OK")
</pallas_src>

<mosaic_0001>
module attributes {stable_mosaic.version = 11 : i64} {
  func.func @_conv1d_mxu_kernel(%arg0: memref<2x16x128xbf16, #tpu.memory_space<vmem>>, %arg1: memref<272x16xbf16, #tpu.memory_space<vmem>>, %arg2: memref<272x1xf32, #tpu.memory_space<vmem>>, %arg3: memref<2x272x128xf32, #tpu.memory_space<vmem>>) attributes {dimension_semantics = [], scalar_prefetch = 0 : i64, scratch_operands = 0 : i64, tpu.core_type = #tpu.core_type<tc>} {
    %c0 = arith.constant 0 : index
    %c0_0 = arith.constant 0 : index
    %0 = vector.load %arg1[%c0, %c0_0] : memref<272x16xbf16, #tpu.memory_space<vmem>>, vector<272x16xbf16>
    %c0_1 = arith.constant 0 : index
    %c0_2 = arith.constant 0 : index
    %1 = vector.load %arg2[%c0_1, %c0_2] : memref<272x1xf32, #tpu.memory_space<vmem>>, vector<272x1xf32>
    %c0_3 = arith.constant 0 : index
    %c0_4 = arith.constant 0 : index
    %c0_5 = arith.constant 0 : index
    %2 = vector.load %arg0[%c0_3, %c0_4, %c0_5] : memref<2x16x128xbf16, #tpu.memory_space<vmem>>, vector<1x16x128xbf16>
    %3 = vector.shape_cast %2 : vector<1x16x128xbf16> to vector<16x128xbf16>
    %cst = arith.constant dense<0.000000e+00> : vector<272x128xf32>
    %4 = tpu.matmul %0, %3, %cst {dimension_numbers = #tpu.dot_dimension_numbers<[1], [0], [0], [1], [0, 0, 1, 1], [], []>} : vector<272x16xbf16>, vector<16x128xbf16>, vector<272x128xf32> -> vector<272x128xf32>
    %5 = vector.broadcast %1 : vector<272x1xf32> to vector<272x128xf32>
    %6 = arith.addf %4, %5 : vector<272x128xf32>
    %c0_6 = arith.constant 0 : index
    %c0_7 = arith.constant 0 : index
    %c0_8 = arith.constant 0 : index
    %7 = vector.load %arg3[%c0_6, %c0_7, %c0_8] : memref<2x272x128xf32, #tpu.memory_space<vmem>>, vector<1x272x128xf32>
    %8 = vector.shape_cast %7 : vector<1x272x128xf32> to vector<272x128xf32>
    %9 = vector.shape_cast %6 : vector<272x128xf32> to vector<1x272x128xf32>
    tpu.vector_store %arg3[%c0_6, %c0_7, %c0_8], %9 {strides = array<i32>} : memref<2x272x128xf32, #tpu.memory_space<vmem>>, vector<1x272x128xf32>,
    %c1 = arith.constant 1 : index
    %c0_9 = arith.constant 0 : index
    %c0_10 = arith.constant 0 : index
    %10 = vector.load %arg0[%c1, %c0_9, %c0_10] : memref<2x16x128xbf16, #tpu.memory_space<vmem>>, vector<1x16x128xbf16>
    %11 = vector.shape_cast %10 : vector<1x16x128xbf16> to vector<16x128xbf16>
    %cst_11 = arith.constant dense<0.000000e+00> : vector<272x128xf32>
    %12 = tpu.matmul %0, %11, %cst_11 {dimension_numbers = #tpu.dot_dimension_numbers<[1], [0], [0], [1], [0, 0, 1, 1], [], []>} : vector<272x16xbf16>, vector<16x128xbf16>, vector<272x128xf32> -> vector<272x128xf32>
    %13 = vector.broadcast %1 : vector<272x1xf32> to vector<272x128xf32>
    %14 = arith.addf %12, %13 : vector<272x128xf32>
    %c1_12 = arith.constant 1 : index
    %c0_13 = arith.constant 0 : index
    %c0_14 = arith.constant 0 : index
    %15 = vector.load %arg3[%c1_12, %c0_13, %c0_14] : memref<2x272x128xf32, #tpu.memory_space<vmem>>, vector<1x272x128xf32>
    %16 = vector.shape_cast %15 : vector<1x272x128xf32> to vector<272x128xf32>
    %17 = vector.shape_cast %14 : vector<272x128xf32> to vector<1x272x128xf32>
    tpu.vector_store %arg3[%c1_12, %c0_13, %c0_14], %17 {strides = array<i32>} : memref<2x272x128xf32, #tpu.memory_space<vmem>>, vector<1x272x128xf32>,
    return
  }
}

</mosaic_0001>

<llo_original>
// kernel: conv1d_same_pallas.1
$region0: #{conv1d_same_pallas.1}
  #allocation0 [shape = 'u32[]', space=smem, size = 0x4, offset = 0x4, fixed_abs, tag = 'smem constant byte address 0x4 - core index']
  #allocation1 [shape = 'u32[144,128]{1,0:T(1,128)}', space=vmem, size = 0x12000, scoped, tag = 'internal scratch']
  %s0 = inlined_call_operand.vmem [shape: bf16[2,16,128], index: 0, kind: input, shape index: {}]
  %s1 = inlined_call_operand.vmem [shape: bf16[272,16], index: 1, kind: input, shape index: {}]
  %s2 = inlined_call_operand.vmem [shape: f32[272,1], index: 2, kind: input, shape index: {}]
  %s3 = inlined_call_operand.hbm [shape: f32[2,272,128], index: 3, kind: output, shape index: {}]
  %s4 = sld [smem:[#allocation0]]
  $region22: #{conv1d_same_pallas.1} parent=0
    _
  %s6 = ssub.s32 1, %s4
  %s7 = scalar_select 0, %s6, %s4
  $region1: #{conv1d_same_pallas.1} parent=0
    #allocation2 [shape = 'u8[278528]{0}', space=vmem, size = 0x44000, scoped, tag = 'output window, operand 0, single buffered']
    #allocation3 [shape = 's32[1]{0}', space=sflag, size = 0x4, scoped, tag = 'scoped memory for conv1d_same_pallas.1']
    %8 = vsyncpa [#allocation3], 0
    // Predicated region
    $region2: #{conv1d_same_pallas.1} parent=1 // pred_check
      _
    $region3: #{conv1d_same_pallas.1} parent=1 // pred_check_branch
      %10 = sbr.rel (0) target = $region5
    $region4: #{conv1d_same_pallas.1} parent=1 // pred_region
      _
    $region5: #{conv1d_same_pallas.1} parent=1 // pred_fallthru
      _
    // Predicated region
    $region6: #{conv1d_same_pallas.1} parent=1 // pred_check
      _
    $region7: #{conv1d_same_pallas.1} parent=1 // pred_check_branch
      %12 = sbr.rel (0) target = $region9
    $region8: #{conv1d_same_pallas.1} parent=1 // pred_region
      _
    $region9: #{conv1d_same_pallas.1} parent=1 // pred_fallthru
      _
    // Predicated region
    $region10: #{conv1d_same_pallas.1} parent=1 // pred_check
      _
    $region11: #{conv1d_same_pallas.1} parent=1 // pred_check_branch
      %14 = sbr.rel (0) target = $region13
    $region12: #{conv1d_same_pallas.1} parent=1 // pred_region
      _
    $region13: #{conv1d_same_pallas.1} parent=1 // pred_fallthru
      _
    %v16 = vld [vmem:[%s1] sm:$0xf]
    %v17 = vld [vmem:[%s1 + $0x4] sm:$0xf]
    %v18 = vld [vmem:[%s1 + $0x8] sm:$0xf]
    %v19 = vld [vmem:[%s1 + $0xc] sm:$0xf]
    %v20 = vld [vmem:[%s1 + $0x10] sm:$0xf]
    %v21 = vld [vmem:[%s1 + $0x14] sm:$0xf]
    %v22 = vld [vmem:[%s1 + $0x18] sm:$0xf]
    %v23 = vld [vmem:[%s1 + $0x1c] sm:$0xf]
    %v24 = vld [vmem:[%s1 + $0x20] sm:$0xf]
    %v25 = vld [vmem:[%s1 + $0x24] sm:$0xf]
    %v26 = vld [vmem:[%s1 + $0x28] sm:$0xf]
    %v27 = vld [vmem:[%s1 + $0x2c] sm:$0xf]
    %v28 = vld [vmem:[%s1 + $0x30] sm:$0xf]
    %v29 = vld [vmem:[%s1 + $0x34] sm:$0xf]
    %v30 = vld [vmem:[%s1 + $0x38] sm:$0xf]
    %v31 = vld [vmem:[%s1 + $0x3c] sm:$0xf]
    %v32 = vld [vmem:[%s1 + $0x40] sm:$0xf]
    %v33 = vld [vmem:[%s1 + $0x44] sm:$0xf]
    %v34 = vld [vmem:[%s1 + $0x48] sm:$0xf]
    %v35 = vld [vmem:[%s1 + $0x4c] sm:$0xf]
    %v36 = vld [vmem:[%s1 + $0x50] sm:$0xf]
    %v37 = vld [vmem:[%s1 + $0x54] sm:$0xf]
    %v38 = vld [vmem:[%s1 + $0x58] sm:$0xf]
    %v39 = vld [vmem:[%s1 + $0x5c] sm:$0xf]
    %v40 = vld [vmem:[%s1 + $0x60] sm:$0xf]
    %v41 = vld [vmem:[%s1 + $0x64] sm:$0xf]
    %v42 = vld [vmem:[%s1 + $0x68] sm:$0xf]
    %v43 = vld [vmem:[%s1 + $0x6c] sm:$0xf]
    %v44 = vld [vmem:[%s1 + $0x70] sm:$0xf]
    %v45 = vld [vmem:[%s1 + $0x74] sm:$0xf]
    %v46 = vld [vmem:[%s1 + $0x78] sm:$0xf]
    %v47 = vld [vmem:[%s1 + $0x7c] sm:$0xf]
    %v48 = vld [vmem:[%s1 + $0x80] sm:$0xf]
    %v49 = vld [vmem:[%s1 + $0x84] sm:$0xf]
    %v50 = vld [vmem:[%s2] sm:$0xff]
    %v51 = vld [vmem:[%s2 + $0x8] sm:$0xff]
    %v52 = vld [vmem:[%s2 + $0x10] sm:$0xff]
    %v53 = vld [vmem:[%s2 + $0x18] sm:$0xff]
    %v54 = vld [vmem:[%s2 + $0x20] sm:$0xff]
    %v55 = vld [vmem:[%s2 + $0x28] sm:$0xff]
    %v56 = vld [vmem:[%s2 + $0x30] sm:$0xff]
    %v57 = vld [vmem:[%s2 + $0x38] sm:$0xff]
    %v58 = vld [vmem:[%s2 + $0x40] sm:$0xff]
    %v59 = vld [vmem:[%s2 + $0x48] sm:$0xff]
    %v60 = vld [vmem:[%s2 + $0x50] sm:$0xff]
    %v61 = vld [vmem:[%s2 + $0x58] sm:$0xff]
    %v62 = vld [vmem:[%s2 + $0x60] sm:$0xff]
    %v63 = vld [vmem:[%s2 + $0x68] sm:$0xff]
    %v64 = vld [vmem:[%s2 + $0x70] sm:$0xff]
    %v65 = vld [vmem:[%s2 + $0x78] sm:$0xff]
    %v66 = vld [vmem:[%s2 + $0x80] sm:$0xff]
    %v67 = vld [vmem:[%s2 + $0x88] sm:$0xff]
    %v68 = vld [vmem:[%s2 + $0x90] sm:$0xff]
    %v69 = vld [vmem:[%s2 + $0x98] sm:$0xff]
    %v70 = vld [vmem:[%s2 + $0xa0] sm:$0xff]
    %v71 = vld [vmem:[%s2 + $0xa8] sm:$0xff]
    %v72 = vld [vmem:[%s2 + $0xb0] sm:$0xff]
    %v73 = vld [vmem:[%s2 + $0xb8] sm:$0xff]
    %v74 = vld [vmem:[%s2 + $0xc0] sm:$0xff]
    %v75 = vld [vmem:[%s2 + $0xc8] sm:$0xff]
    %v76 = vld [vmem:[%s2 + $0xd0] sm:$0xff]
    %v77 = vld [vmem:[%s2 + $0xd8] sm:$0xff]
    %v78 = vld [vmem:[%s2 + $0xe0] sm:$0xff]
    %v79 = vld [vmem:[%s2 + $0xe8] sm:$0xff]
    %v80 = vld [vmem:[%s2 + $0xf0] sm:$0xff]
    %v81 = vld [vmem:[%s2 + $0xf8] sm:$0xff]
    %v82 = vld [vmem:[%s2 + $0x100] sm:$0xff]
    %v83 = vld [vmem:[%s2 + $0x108] sm:$0xff]
    %v84 = vld [vmem:[%s0] sm:$0xf]
    %v85 = vld [vmem:[%s0 + $0x4] sm:$0xf]
    %87 = vset.pattern.permute.xlu0 0
    %88 = vperm.xlu0 %87, %v50
    %v89 = vpop.permute.xlu0 %88
    %92 = vset.pattern.permute.xlu0 0
    %93 = vperm.xlu0 %92, %v51
    %v94 = vpop.permute.xlu0 %93
    %97 = vset.pattern.permute.xlu0 0
    %98 = vperm.xlu0 %97, %v52
    %v99 = vpop.permute.xlu0 %98
    %102 = vset.pattern.permute.xlu0 0
    %103 = vperm.xlu0 %102, %v53
    %v104 = vpop.permute.xlu0 %103
    %107 = vset.pattern.permute.xlu0 0
    %108 = vperm.xlu0 %107, %v54
    %v109 = vpop.permute.xlu0 %108
    %112 = vset.pattern.permute.xlu0 0
    %113 = vperm.xlu0 %112, %v55
    %v114 = vpop.permute.xlu0 %113
    %117 = vset.pattern.permute.xlu0 0
    %118 = vperm.xlu0 %117, %v56
    %v119 = vpop.permute.xlu0 %118
    %122 = vset.pattern.permute.xlu0 0
    %123 = vperm.xlu0 %122, %v57
    %v124 = vpop.permute.xlu0 %123
    %127 = vset.pattern.permute.xlu0 0
    %128 = vperm.xlu0 %127, %v58
    %v129 = vpop.permute.xlu0 %128
    %132 = vset.pattern.permute.xlu0 0
    %133 = vperm.xlu0 %132, %v59
    %v134 = vpop.permute.xlu0 %133
    %137 = vset.pattern.permute.xlu0 0
    %138 = vperm.xlu0 %137, %v60
    %v139 = vpop.permute.xlu0 %138
    %142 = vset.pattern.permute.xlu0 0
    %143 = vperm.xlu0 %142, %v61
    %v144 = vpop.permute.xlu0 %143
    %147 = vset.pattern.permute.xlu0 0
    %148 = vperm.xlu0 %147, %v62
    %v149 = vpop.permute.xlu0 %148
    %152 = vset.pattern.permute.xlu0 0
    %153 = vperm.xlu0 %152, %v63
    %v154 = vpop.permute.xlu0 %153
    %157 = vset.pattern.permute.xlu0 0
    %158 = vperm.xlu0 %157, %v64
    %v159 = vpop.permute.xlu0 %158
    %162 = vset.pattern.permute.xlu0 0
    %163 = vperm.xlu0 %162, %v65
    %v164 = vpop.permute.xlu0 %163
    %167 = vset.pattern.permute.xlu0 0
    %168 = vperm.xlu0 %167, %v66
    %v169 = vpop.permute.xlu0 %168
    %172 = vset.pattern.permute.xlu0 0
    %173 = vperm.xlu0 %172, %v67
    %v174 = vpop.permute.xlu0 %173
    %177 = vset.pattern.permute.xlu0 0
    %178 = vperm.xlu0 %177, %v68
    %v179 = vpop.permute.xlu0 %178
    %182 = vset.pattern.permute.xlu0 0
    %183 = vperm.xlu0 %182, %v69
    %v184 = vpop.permute.xlu0 %183
    %187 = vset.pattern.permute.xlu0 0
    %188 = vperm.xlu0 %187, %v70
    %v189 = vpop.permute.xlu0 %188
    %192 = vset.pattern.permute.xlu0 0
    %193 = vperm.xlu0 %192, %v71
    %v194 = vpop.permute.xlu0 %193
    %197 = vset.pattern.permute.xlu0 0
    %198 = vperm.xlu0 %197, %v72
    %v199 = vpop.permute.xlu0 %198
    %202 = vset.pattern.permute.xlu0 0
    %203 = vperm.xlu0 %202, %v73
    %v204 = vpop.permute.xlu0 %203
    %207 = vset.pattern.permute.xlu0 0
    %208 = vperm.xlu0 %207, %v74
    %v209 = vpop.permute.xlu0 %208
    %212 = vset.pattern.permute.xlu0 0
    %213 = vperm.xlu0 %212, %v75
    %v214 = vpop.permute.xlu0 %213
    %217 = vset.pattern.permute.xlu0 0
    %218 = vperm.xlu0 %217, %v76
    %v219 = vpop.permute.xlu0 %218
    %222 = vset.pattern.permute.xlu0 0
    %223 = vperm.xlu0 %222, %v77
    %v224 = vpop.permute.xlu0 %223
    %227 = vset.pattern.permute.xlu0 0
    %228 = vperm.xlu0 %227, %v78
    %v229 = vpop.permute.xlu0 %228
    %232 = vset.pattern.permute.xlu0 0
    %233 = vperm.xlu0 %232, %v79
    %v234 = vpop.permute.xlu0 %233
    %237 = vset.pattern.permute.xlu0 0
    %238 = vperm.xlu0 %237, %v80
    %v239 = vpop.permute.xlu0 %238
    %242 = vset.pattern.permute.xlu0 0
    %243 = vperm.xlu0 %242, %v81
    %v244 = vpop.permute.xlu0 %243
    %247 = vset.pattern.permute.xlu0 0
    %248 = vperm.xlu0 %247, %v82
    %v249 = vpop.permute.xlu0 %248
    %252 = vset.pattern.permute.xlu0 0
    %253 = vperm.xlu0 %252, %v83
    %v254 = vpop.permute.xlu0 %253
    %v290 = vunpack.c.l.b16 %v16
    %v291 = vunpack.c.l.b16 %v17
    %v292 = vunpack.c.l.b16 %v18
    %v293 = vunpack.c.l.b16 %v19
    %v294 = vunpack.c.l.b16 %v20
    %v295 = vunpack.c.l.b16 %v21
    %v296 = vunpack.c.l.b16 %v22
    %v297 = vunpack.c.l.b16 %v23
    %v298 = vunpack.c.l.b16 %v24
    %v299 = vunpack.c.l.b16 %v25
    %v300 = vunpack.c.l.b16 %v26
    %v301 = vunpack.c.l.b16 %v27
    %v302 = vunpack.c.l.b16 %v28
    %v303 = vunpack.c.l.b16 %v29
    %v304 = vunpack.c.l.b16 %v30
    %v305 = vunpack.c.l.b16 %v31
    %v306 = vunpack.c.l.b16 %v32
    %v307 = vunpack.c.l.b16 %v33
    %v308 = vunpack.c.l.b16 %v34
    %v309 = vunpack.c.l.b16 %v35
    %v310 = vunpack.c.l.b16 %v36
    %v311 = vunpack.c.l.b16 %v37
    %v312 = vunpack.c.l.b16 %v38
    %v313 = vunpack.c.l.b16 %v39
    %v314 = vunpack.c.l.b16 %v40
    %v315 = vunpack.c.l.b16 %v41
    %v316 = vunpack.c.l.b16 %v42
    %v317 = vunpack.c.l.b16 %v43
    %v318 = vunpack.c.l.b16 %v44
    %v319 = vunpack.c.l.b16 %v45
    %v320 = vunpack.c.l.b16 %v46
    %v321 = vunpack.c.l.b16 %v47
    %v322 = vunpack.c.l.b16 %v48
    %v323 = vunpack.c.l.b16 %v49
    %v324 = vpack.c.b16 %v291, %v290
    %v325 = vpack.c.b16 %v293, %v292
    %v326 = vpack.c.b16 %v295, %v294
    %v327 = vpack.c.b16 %v297, %v296
    %v328 = vpack.c.b16 %v299, %v298
    %v329 = vpack.c.b16 %v301, %v300
    %v330 = vpack.c.b16 %v303, %v302
    %v331 = vpack.c.b16 %v305, %v304
    %v332 = vpack.c.b16 %v307, %v306
    %v333 = vpack.c.b16 %v309, %v308
    %v334 = vpack.c.b16 %v311, %v310
    %v335 = vpack.c.b16 %v313, %v312
    %v336 = vpack.c.b16 %v315, %v314
    %v337 = vpack.c.b16 %v317, %v316
    %v338 = vpack.c.b16 %v319, %v318
    %v339 = vpack.c.b16 %v321, %v320
    %v340 = vpack.c.b16 %v323, %v322
    %v343 = vunpack.c.l.b16 %v84
    %v344 = vunpack.c.l.b16 %v85
    %v345 = vpack.c.b16 %v344, %v343
    %vm347 = vcmask 130048
    %v349 = vsel %vm347, %v324, 0
    %v352 = vsel %vm347, %v325, 0
    %v355 = vsel %vm347, %v326, 0
    %v358 = vsel %vm347, %v327, 0
    %v361 = vsel %vm347, %v328, 0
    %v364 = vsel %vm347, %v329, 0
    %v367 = vsel %vm347, %v330, 0
    %v370 = vsel %vm347, %v331, 0
    %v373 = vsel %vm347, %v332, 0
    %v376 = vsel %vm347, %v333, 0
    %v379 = vsel %vm347, %v334, 0
    %v382 = vsel %vm347, %v335, 0
    %v385 = vsel %vm347, %v336, 0
    %v388 = vsel %vm347, %v337, 0
    %v391 = vsel %vm347, %v338, 0
    %v394 = vsel %vm347, %v339, 0
    %v397 = vsel %vm347, %v340, 0
    %399 = vmatprep.subr.bf16.mxu0 0
    %400 = vmatpush1.bf16.msra.mxu0 %v345
    %401 = vmatprep.subr.bf16.mxu0 0
    %402 = vmatpush1.bf16.msra.mxu0 0
    %403 = vmatprep.subr.bf16.mxu0 0
    %404 = vmatpush1.bf16.msra.mxu0 0
    %405 = vmatprep.subr.bf16.mxu0 0
    %406 = vmatpush1.bf16.msra.mxu0 0
    %407 = vmatprep.subr.bf16.mxu0 0
    %408 = vmatpush1.bf16.msra.mxu0 0
    %409 = vmatprep.subr.bf16.mxu0 0
    %410 = vmatpush1.bf16.msra.mxu0 0
    %411 = vmatprep.subr.bf16.mxu0 0
    %412 = vmatpush1.bf16.msra.mxu0 0
    %413 = vmatprep.subr.bf16.mxu0 0
    %414 = vmatpush1.bf16.msra.mxu0 0
    %415 = vmatprep.subr.bf16.mxu0 0
    %416 = vmatpush1.bf16.msra.mxu0 0
    %417 = vmatprep.subr.bf16.mxu0 0
    %418 = vmatpush1.bf16.msra.mxu0 0
    %419 = vmatprep.subr.bf16.mxu0 0
    %420 = vmatpush1.bf16.msra.mxu0 0
    %421 = vmatprep.subr.bf16.mxu0 0
    %422 = vmatpush1.bf16.msra.mxu0 0
    %423 = vmatprep.subr.bf16.mxu0 0
    %424 = vmatpush1.bf16.msra.mxu0 0
    %425 = vmatprep.subr.bf16.mxu0 0
    %426 = vmatpush1.bf16.msra.mxu0 0
    %427 = vmatprep.subr.bf16.mxu0 0
    %428 = vmatpush1.bf16.msra.mxu0 0
    %429 = vmatprep.subr.bf16.mxu0 0
    %430 = vmatpush1.bf16.msra.mxu0 0
    %431 = vmatprep.mubr.bf16.mxu0 0
    %432 = vmatmul.mubr.bf16.gmra.mrb[0].mxu0 %v349
    %v433 = vpop.f32.mrb[0].mxu0
    %v434 = vadd.f32 %v89, %v433
    %v435 = vpop.f32.mrb[0].mxu0
    %v436 = vpop.f32.mrb[0].mxu0
    %v437 = vadd.f32 %v94, %v436
    %v438 = vpop.f32.mrb[0].mxu0
    %439 = vmatprep.mubr.bf16.mxu0 0
    %440 = vmatmul.mubr.bf16.gmra.mrb[0].mxu0 %v352
    %v441 = vpop.f32.mrb[0].mxu0
    %v442 = vadd.f32 %v99, %v441
    %v443 = vpop.f32.mrb[0].mxu0
    %v444 = vpop.f32.mrb[0].mxu0
    %v445 = vadd.f32 %v104, %v444
    %v446 = vpop.f32.mrb[0].mxu0
    %447 = vmatprep.mubr.bf16.mxu0 0
    %448 = vmatmul.mubr.bf16.gmra.mrb[0].mxu0 %v355
    %v449 = vpop.f32.mrb[0].mxu0
    %v450 = vadd.f32 %v109, %v449
    %v451 = vpop.f32.mrb[0].mxu0
    %v452 = vpop.f32.mrb[0].mxu0
    %v453 = vadd.f32 %v114, %v452
    %v454 = vpop.f32.mrb[0].mxu0
    %455 = vmatprep.mubr.bf16.mxu0 0
    %456 = vmatmul.mubr.bf16.gmra.mrb[0].mxu0 %v358
    %v457 = vpop.f32.mrb[0].mxu0
    %v458 = vadd.f32 %v119, %v457
    %v459 = vpop.f32.mrb[0].mxu0
    %v460 = vpop.f32.mrb[0].mxu0
    %v461 = vadd.f32 %v124, %v460
    %v462 = vpop.f32.mrb[0].mxu0
    %463 = vmatprep.mubr.bf16.mxu0 0
    %464 = vmatmul.mubr.bf16.gmra.mrb[0].mxu0 %v361
    %v465 = vpop.f32.mrb[0].mxu0
    %v466 = vadd.f32 %v129, %v465
    %v467 = vpop.f32.mrb[0].mxu0
    %v468 = vpop.f32.mrb[0].mxu0
    %v469 = vadd.f32 %v134, %v468
    %v470 = vpop.f32.mrb[0].mxu0
    %471 = vmatprep.mubr.bf16.mxu0 0
    %472 = vmatmul.mubr.bf16.gmra.mrb[0].mxu0 %v364
    %v473 = vpop.f32.mrb[0].mxu0
    %v474 = vadd.f32 %v139, %v473
    %v475 = vpop.f32.mrb[0].mxu0
    %v476 = vpop.f32.mrb[0].mxu0
    %v477 = vadd.f32 %v144, %v476
    %v478 = vpop.f32.mrb[0].mxu0
    %479 = vmatprep.mubr.bf16.mxu0 0
    %480 = vmatmul.mubr.bf16.gmra.mrb[0].mxu0 %v367
    %v481 = vpop.f32.mrb[0].mxu0
    %v482 = vadd.f32 %v149, %v481
    %v483 = vpop.f32.mrb[0].mxu0
    %v484 = vpop.f32.mrb[0].mxu0
    %v485 = vadd.f32 %v154, %v484
    %v486 = vpop.f32.mrb[0].mxu0
    %487 = vmatprep.mubr.bf16.mxu0 0
    %488 = vmatmul.mubr.bf16.gmra.mrb[0].mxu0 %v370
    %v489 = vpop.f32.mrb[0].mxu0
    %v490 = vadd.f32 %v159, %v489
    %v491 = vpop.f32.mrb[0].mxu0
    %v492 = vpop.f32.mrb[0].mxu0
    %v493 = vadd.f32 %v164, %v492
    %v494 = vpop.f32.mrb[0].mxu0
    %495 = vmatprep.mubr.bf16.mxu0 0
    %496 = vmatmul.mubr.bf16.gmra.mrb[0].mxu0 %v373
    %v497 = vpop.f32.mrb[0].mxu0
    %v498 = vadd.f32 %v169, %v497
    %v499 = vpop.f32.mrb[0].mxu0
    %v500 = vpop.f32.mrb[0].mxu0
    %v501 = vadd.f32 %v174, %v500
    %v502 = vpop.f32.mrb[0].mxu0
    %503 = vmatprep.mubr.bf16.mxu0 0
    %504 = vmatmul.mubr.bf16.gmra.mrb[0].mxu0 %v376
    %v505 = vpop.f32.mrb[0].mxu0
    %v506 = vadd.f32 %v179, %v505
    %v507 = vpop.f32.mrb[0].mxu0
    %v508 = vpop.f32.mrb[0].mxu0
    %v509 = vadd.f32 %v184, %v508
    %v510 = vpop.f32.mrb[0].mxu0
    %511 = vmatprep.mubr.bf16.mxu0 0
    %512 = vmatmul.mubr.bf16.gmra.mrb[0].mxu0 %v379
    %v513 = vpop.f32.mrb[0].mxu0
    %v514 = vadd.f32 %v189, %v513
    %v515 = vpop.f32.mrb[0].mxu0
    %v516 = vpop.f32.mrb[0].mxu0
    %v517 = vadd.f32 %v194, %v516
    %v518 = vpop.f32.mrb[0].mxu0
    %519 = vmatprep.mubr.bf16.mxu0 0
    %520 = vmatmul.mubr.bf16.gmra.mrb[0].mxu0 %v382
    %v521 = vpop.f32.mrb[0].mxu0
    %v522 = vadd.f32 %v199, %v521
    %v523 = vpop.f32.mrb[0].mxu0
    %v524 = vpop.f32.mrb[0].mxu0
    %v525 = vadd.f32 %v204, %v524
    %v526 = vpop.f32.mrb[0].mxu0
    %527 = vmatprep.mubr.bf16.mxu0 0
    %528 = vmatmul.mubr.bf16.gmra.mrb[0].mxu0 %v385
    %v529 = vpop.f32.mrb[0].mxu0
    %v530 = vadd.f32 %v209, %v529
    %v531 = vpop.f32.mrb[0].mxu0
    %v532 = vpop.f32.mrb[0].mxu0
    %v533 = vadd.f32 %v214, %v532
    %v534 = vpop.f32.mrb[0].mxu0
    %535 = vmatprep.mubr.bf16.mxu0 0
    %536 = vmatmul.mubr.bf16.gmra.mrb[0].mxu0 %v388
    %v537 = vpop.f32.mrb[0].mxu0
    %v538 = vadd.f32 %v219, %v537
    %v539 = vpop.f32.mrb[0].mxu0
    %v540 = vpop.f32.mrb[0].mxu0
    %v541 = vadd.f32 %v224, %v540
    %v542 = vpop.f32.mrb[0].mxu0
    %543 = vmatprep.mubr.bf16.mxu0 0
    %544 = vmatmul.mubr.bf16.gmra.mrb[0].mxu0 %v391
    %v545 = vpop.f32.mrb[0].mxu0
    %v546 = vadd.f32 %v229, %v545
    %v547 = vpop.f32.mrb[0].mxu0
    %v548 = vpop.f32.mrb[0].mxu0
    %v549 = vadd.f32 %v234, %v548
    %v550 = vpop.f32.mrb[0].mxu0
    %551 = vmatprep.mubr.bf16.mxu0 0
    %552 = vmatmul.mubr.bf16.gmra.mrb[0].mxu0 %v394
    %v553 = vpop.f32.mrb[0].mxu0
    %v554 = vadd.f32 %v239, %v553
    %v555 = vpop.f32.mrb[0].mxu0
    %v556 = vpop.f32.mrb[0].mxu0
    %v557 = vadd.f32 %v244, %v556
    %v558 = vpop.f32.mrb[0].mxu0
    %559 = vmatprep.mubr.bf16.mxu0 0
    %560 = vmatmul.mubr.bf16.gmra.mrb[0].mxu0 %v397
    %v561 = vpop.f32.mrb[0].mxu0
    %v562 = vadd.f32 %v249, %v561
    %v563 = vpop.f32.mrb[0].mxu0
    %v564 = vpop.f32.mrb[0].mxu0
    %v565 = vadd.f32 %v254, %v564
    %v566 = vpop.f32.mrb[0].mxu0
    %567 = vdwg.mxu0
    %568 = vst [vmem:[#allocation2] sm:$0xff] %v434
    %569 = vst [vmem:[#allocation2 + $0x8] sm:$0xff] %v437
    %570 = vst [vmem:[#allocation2 + $0x10] sm:$0xff] %v442
    %571 = vst [vmem:[#allocation2 + $0x18] sm:$0xff] %v445
    %572 = vst [vmem:[#allocation2 + $0x20] sm:$0xff] %v450
    %573 = vst [vmem:[#allocation2 + $0x28] sm:$0xff] %v453
    %574 = vst [vmem:[#allocation2 + $0x30] sm:$0xff] %v458
    %575 = vst [vmem:[#allocation2 + $0x38] sm:$0xff] %v461
    %576 = vst [vmem:[#allocation2 + $0x40] sm:$0xff] %v466
    %577 = vst [vmem:[#allocation2 + $0x48] sm:$0xff] %v469
    %578 = vst [vmem:[#allocation2 + $0x50] sm:$0xff] %v474
    %579 = vst [vmem:[#allocation2 + $0x58] sm:$0xff] %v477
    %580 = vst [vmem:[#allocation2 + $0x60] sm:$0xff] %v482
    %581 = vst [vmem:[#allocation2 + $0x68] sm:$0xff] %v485
    %582 = vst [vmem:[#allocation2 + $0x70] sm:$0xff] %v490
    %583 = vst [vmem:[#allocation2 + $0x78] sm:$0xff] %v493
    %584 = vst [vmem:[#allocation2 + $0x80] sm:$0xff] %v498
    %585 = vst [vmem:[#allocation2 + $0x88] sm:$0xff] %v501
    %586 = vst [vmem:[#allocation2 + $0x90] sm:$0xff] %v506
    %587 = vst [vmem:[#allocation2 + $0x98] sm:$0xff] %v509
    %588 = vst [vmem:[#allocation2 + $0xa0] sm:$0xff] %v514
    %589 = vst [vmem:[#allocation2 + $0xa8] sm:$0xff] %v517
    %590 = vst [vmem:[#allocation2 + $0xb0] sm:$0xff] %v522
    %591 = vst [vmem:[#allocation2 + $0xb8] sm:$0xff] %v525
    %592 = vst [vmem:[#allocation2 + $0xc0] sm:$0xff] %v530
    %593 = vst [vmem:[#allocation2 + $0xc8] sm:$0xff] %v533
    %594 = vst [vmem:[#allocation2 + $0xd0] sm:$0xff] %v538
    %595 = vst [vmem:[#allocation2 + $0xd8] sm:$0xff] %v541
    %596 = vst [vmem:[#allocation2 + $0xe0] sm:$0xff] %v546
    %597 = vst [vmem:[#allocation2 + $0xe8] sm:$0xff] %v549
    %598 = vst [vmem:[#allocation2 + $0xf0] sm:$0xff] %v554
    %599 = vst [vmem:[#allocation2 + $0xf8] sm:$0xff] %v557
    %600 = vst [vmem:[#allocation2 + $0x100] sm:$0xff] %v562
    %601 = vst [vmem:[#allocation2 + $0x108] sm:$0xff] %v565
    %s602 = scalar_lea.vmem %s0, 8
    %v603 = vld [vmem:[%s602] sm:$0xf]
    %v604 = vld [vmem:[%s602 + $0x4] sm:$0xf]
    %v607 = vunpack.c.l.b16 %v603
    %v608 = vunpack.c.l.b16 %v604
    %v609 = vpack.c.b16 %v608, %v607
    %611 = vmatprep.subr.bf16.mxu0 0
    %612 = vmatpush1.bf16.msra.mxu0 %v609
    %613 = vmatprep.subr.bf16.mxu0 0
    %614 = vmatpush1.bf16.msra.mxu0 0
    %615 = vmatprep.subr.bf16.mxu0 0
    %616 = vmatpush1.bf16.msra.mxu0 0
    %617 = vmatprep.subr.bf16.mxu0 0
    %618 = vmatpush1.bf16.msra.mxu0 0
    %619 = vmatprep.subr.bf16.mxu0 0
    %620 = vmatpush1.bf16.msra.mxu0 0
    %621 = vmatprep.subr.bf16.mxu0 0
    %622 = vmatpush1.bf16.msra.mxu0 0
    %623 = vmatprep.subr.bf16.mxu0 0
    %624 = vmatpush1.bf16.msra.mxu0 0
    %625 = vmatprep.subr.bf16.mxu0 0
    %626 = vmatpush1.bf16.msra.mxu0 0
    %627 = vmatprep.subr.bf16.mxu0 0
    %628 = vmatpush1.bf16.msra.mxu0 0
    %629 = vmatprep.subr.bf16.mxu0 0
    %630 = vmatpush1.bf16.msra.mxu0 0
    %631 = vmatprep.subr.bf16.mxu0 0
    %632 = vmatpush1.bf16.msra.mxu0 0
    %633 = vmatprep.subr.bf16.mxu0 0
    %634 = vmatpush1.bf16.msra.mxu0 0
    %635 = vmatprep.subr.bf16.mxu0 0
    %636 = vmatpush1.bf16.msra.mxu0 0
    %637 = vmatprep.subr.bf16.mxu0 0
    %638 = vmatpush1.bf16.msra.mxu0 0
    %639 = vmatprep.subr.bf16.mxu0 0
    %640 = vmatpush1.bf16.msra.mxu0 0
    %641 = vmatprep.subr.bf16.mxu0 0
    %642 = vmatpush1.bf16.msra.mxu0 0
    %643 = vmatprep.mubr.bf16.mxu0 0
    %644 = vmatmul.mubr.bf16.gmra.mrb[0].mxu0 %v349
    %v645 = vpop.f32.mrb[0].mxu0
    %v646 = vadd.f32 %v89, %v645
    %v647 = vpop.f32.mrb[0].mxu0
    %v648 = vpop.f32.mrb[0].mxu0
    %v649 = vadd.f32 %v94, %v648
    %v650 = vpop.f32.mrb[0].mxu0
    %651 = vmatprep.mubr.bf16.mxu0 0
    %652 = vmatmul.mubr.bf16.gmra.mrb[0].mxu0 %v352
    %v653 = vpop.f32.mrb[0].mxu0
    %v654 = vadd.f32 %v99, %v653
    %v655 = vpop.f32.mrb[0].mxu0
    %v656 = vpop.f32.mrb[0].mxu0
    %v657 = vadd.f32 %v104, %v656
    %v658 = vpop.f32.mrb[0].mxu0
    %659 = vmatprep.mubr.bf16.mxu0 0
    %660 = vmatmul.mubr.bf16.gmra.mrb[0].mxu0 %v355
    %v661 = vpop.f32.mrb[0].mxu0
    %v662 = vadd.f32 %v109, %v661
    %v663 = vpop.f32.mrb[0].mxu0
    %v664 = vpop.f32.mrb[0].mxu0
    %v665 = vadd.f32 %v114, %v664
    %v666 = vpop.f32.mrb[0].mxu0
    %667 = vmatprep.mubr.bf16.mxu0 0
    %668 = vmatmul.mubr.bf16.gmra.mrb[0].mxu0 %v358
    %v669 = vpop.f32.mrb[0].mxu0
    %v670 = vadd.f32 %v119, %v669
    %v671 = vpop.f32.mrb[0].mxu0
    %v672 = vpop.f32.mrb[0].mxu0
    %v673 = vadd.f32 %v124, %v672
    %v674 = vpop.f32.mrb[0].mxu0
    %675 = vmatprep.mubr.bf16.mxu0 0
    %676 = vmatmul.mubr.bf16.gmra.mrb[0].mxu0 %v361
    %v677 = vpop.f32.mrb[0].mxu0
    %v678 = vadd.f32 %v129, %v677
    %v679 = vpop.f32.mrb[0].mxu0
    %v680 = vpop.f32.mrb[0].mxu0
    %v681 = vadd.f32 %v134, %v680
    %v682 = vpop.f32.mrb[0].mxu0
    %683 = vmatprep.mubr.bf16.mxu0 0
    %684 = vmatmul.mubr.bf16.gmra.mrb[0].mxu0 %v364
    %v685 = vpop.f32.mrb[0].mxu0
    %v686 = vadd.f32 %v139, %v685
    %v687 = vpop.f32.mrb[0].mxu0
    %v688 = vpop.f32.mrb[0].mxu0
    %v689 = vadd.f32 %v144, %v688
    %v690 = vpop.f32.mrb[0].mxu0
    %691 = vmatprep.mubr.bf16.mxu0 0
    %692 = vmatmul.mubr.bf16.gmra.mrb[0].mxu0 %v367
    %v693 = vpop.f32.mrb[0].mxu0
    %v694 = vadd.f32 %v149, %v693
    %v695 = vpop.f32.mrb[0].mxu0
    %v696 = vpop.f32.mrb[0].mxu0
    %v697 = vadd.f32 %v154, %v696
    %v698 = vpop.f32.mrb[0].mxu0
    %699 = vmatprep.mubr.bf16.mxu0 0
    %700 = vmatmul.mubr.bf16.gmra.mrb[0].mxu0 %v370
    %v701 = vpop.f32.mrb[0].mxu0
    %v702 = vadd.f32 %v159, %v701
    %v703 = vpop.f32.mrb[0].mxu0
    %v704 = vpop.f32.mrb[0].mxu0
    %v705 = vadd.f32 %v164, %v704
    %v706 = vpop.f32.mrb[0].mxu0
    %707 = vmatprep.mubr.bf16.mxu0 0
    %708 = vmatmul.mubr.bf16.gmra.mrb[0].mxu0 %v373
    %v709 = vpop.f32.mrb[0].mxu0
    %v710 = vadd.f32 %v169, %v709
    %v711 = vpop.f32.mrb[0].mxu0
    %v712 = vpop.f32.mrb[0].mxu0
    %v713 = vadd.f32 %v174, %v712
    %v714 = vpop.f32.mrb[0].mxu0
    %715 = vmatprep.mubr.bf16.mxu0 0
    %716 = vmatmul.mubr.bf16.gmra.mrb[0].mxu0 %v376
    %v717 = vpop.f32.mrb[0].mxu0
    %v718 = vadd.f32 %v179, %v717
    %v719 = vpop.f32.mrb[0].mxu0
    %v720 = vpop.f32.mrb[0].mxu0
    %v721 = vadd.f32 %v184, %v720
    %v722 = vpop.f32.mrb[0].mxu0
    %723 = vmatprep.mubr.bf16.mxu0 0
    %724 = vmatmul.mubr.bf16.gmra.mrb[0].mxu0 %v379
    %v725 = vpop.f32.mrb[0].mxu0
    %v726 = vadd.f32 %v189, %v725
    %v727 = vpop.f32.mrb[0].mxu0
    %v728 = vpop.f32.mrb[0].mxu0
    %v729 = vadd.f32 %v194, %v728
    %v730 = vpop.f32.mrb[0].mxu0
    %731 = vmatprep.mubr.bf16.mxu0 0
    %732 = vmatmul.mubr.bf16.gmra.mrb[0].mxu0 %v382
    %v733 = vpop.f32.mrb[0].mxu0
    %v734 = vadd.f32 %v199, %v733
    %v735 = vpop.f32.mrb[0].mxu0
    %v736 = vpop.f32.mrb[0].mxu0
    %v737 = vadd.f32 %v204, %v736
    %v738 = vpop.f32.mrb[0].mxu0
    %739 = vmatprep.mubr.bf16.mxu0 0
    %740 = vmatmul.mubr.bf16.gmra.mrb[0].mxu0 %v385
    %v741 = vpop.f32.mrb[0].mxu0
    %v742 = vadd.f32 %v209, %v741
    %v743 = vpop.f32.mrb[0].mxu0
    %v744 = vpop.f32.mrb[0].mxu0
    %v745 = vadd.f32 %v214, %v744
    %v746 = vpop.f32.mrb[0].mxu0
    %747 = vmatprep.mubr.bf16.mxu0 0
    %748 = vmatmul.mubr.bf16.gmra.mrb[0].mxu0 %v388
    %v749 = vpop.f32.mrb[0].mxu0
    %v750 = vadd.f32 %v219, %v749
    %v751 = vpop.f32.mrb[0].mxu0
    %v752 = vpop.f32.mrb[0].mxu0
    %v753 = vadd.f32 %v224, %v752
    %v754 = vpop.f32.mrb[0].mxu0
    %755 = vmatprep.mubr.bf16.mxu0 0
    %756 = vmatmul.mubr.bf16.gmra.mrb[0].mxu0 %v391
    %v757 = vpop.f32.mrb[0].mxu0
    %v758 = vadd.f32 %v229, %v757
    %v759 = vpop.f32.mrb[0].mxu0
    %v760 = vpop.f32.mrb[0].mxu0
    %v761 = vadd.f32 %v234, %v760
    %v762 = vpop.f32.mrb[0].mxu0
    %763 = vmatprep.mubr.bf16.mxu0 0
    %764 = vmatmul.mubr.bf16.gmra.mrb[0].mxu0 %v394
    %v765 = vpop.f32.mrb[0].mxu0
    %v766 = vadd.f32 %v239, %v765
    %v767 = vpop.f32.mrb[0].mxu0
    %v768 = vpop.f32.mrb[0].mxu0
    %v769 = vadd.f32 %v244, %v768
    %v770 = vpop.f32.mrb[0].mxu0
    %771 = vmatprep.mubr.bf16.mxu0 0
    %772 = vmatmul.mubr.bf16.gmra.mrb[0].mxu0 %v397
    %v773 = vpop.f32.mrb[0].mxu0
    %v774 = vadd.f32 %v249, %v773
    %v775 = vpop.f32.mrb[0].mxu0
    %v776 = vpop.f32.mrb[0].mxu0
    %v777 = vadd.f32 %v254, %v776
    %v778 = vpop.f32.mrb[0].mxu0
    %779 = vdwg.mxu0
    %s780 = scalar_lea.vmem [#allocation2], 272
    %781 = vst [vmem:[%s780] sm:$0xff] %v646
    %782 = vst [vmem:[%s780 + $0x8] sm:$0xff] %v649
    %783 = vst [vmem:[%s780 + $0x10] sm:$0xff] %v654
    %784 = vst [vmem:[%s780 + $0x18] sm:$0xff] %v657
    %785 = vst [vmem:[%s780 + $0x20] sm:$0xff] %v662
    %786 = vst [vmem:[%s780 + $0x28] sm:$0xff] %v665
    %787 = vst [vmem:[%s780 + $0x30] sm:$0xff] %v670
    %788 = vst [vmem:[%s780 + $0x38] sm:$0xff] %v673
    %789 = vst [vmem:[%s780 + $0x40] sm:$0xff] %v678
    %790 = vst [vmem:[%s780 + $0x48] sm:$0xff] %v681
    %791 = vst [vmem:[%s780 + $0x50] sm:$0xff] %v686
    %792 = vst [vmem:[%s780 + $0x58] sm:$0xff] %v689
    %793 = vst [vmem:[%s780 + $0x60] sm:$0xff] %v694
    %794 = vst [vmem:[%s780 + $0x68] sm:$0xff] %v697
    %795 = vst [vmem:[%s780 + $0x70] sm:$0xff] %v702
    %796 = vst [vmem:[%s780 + $0x78] sm:$0xff] %v705
    %797 = vst [vmem:[%s780 + $0x80] sm:$0xff] %v710
    %798 = vst [vmem:[%s780 + $0x88] sm:$0xff] %v713
    %799 = vst [vmem:[%s780 + $0x90] sm:$0xff] %v718
    %800 = vst [vmem:[%s780 + $0x98] sm:$0xff] %v721
    %801 = vst [vmem:[%s780 + $0xa0] sm:$0xff] %v726
    %802 = vst [vmem:[%s780 + $0xa8] sm:$0xff] %v729
    %803 = vst [vmem:[%s780 + $0xb0] sm:$0xff] %v734
    %804 = vst [vmem:[%s780 + $0xb8] sm:$0xff] %v737
    %805 = vst [vmem:[%s780 + $0xc0] sm:$0xff] %v742
    %806 = vst [vmem:[%s780 + $0xc8] sm:$0xff] %v745
    %807 = vst [vmem:[%s780 + $0xd0] sm:$0xff] %v750
    %808 = vst [vmem:[%s780 + $0xd8] sm:$0xff] %v753
    %809 = vst [vmem:[%s780 + $0xe0] sm:$0xff] %v758
    %810 = vst [vmem:[%s780 + $0xe8] sm:$0xff] %v761
    %811 = vst [vmem:[%s780 + $0xf0] sm:$0xff] %v766
    %812 = vst [vmem:[%s780 + $0xf8] sm:$0xff] %v769
    %813 = vst [vmem:[%s780 + $0x100] sm:$0xff] %v774
    %814 = vst [vmem:[%s780 + $0x108] sm:$0xff] %v777
    // Predicated region
    $region14: #{conv1d_same_pallas.1} parent=1 // pred_check
      _
    $region15: #{conv1d_same_pallas.1} parent=1 // pred_check_branch
      %816 = sbr.rel (0) target = $region17
    $region16: #{conv1d_same_pallas.1} parent=1 // pred_region
      %s818 = ssub.s32 8704, 8704
      %819 = vsyncadd [#allocation3], %s818
      %s820 = sshll.u32 [#allocation2], 4
      %s821 = int_to_ptr.vmem [resolvable:$true] %s820
      %826 = dma.vmem_to_hbm [thread:$0]  %s821, 8704, %s3, [#allocation3], 128, 128, 8
    $region17: #{conv1d_same_pallas.1} parent=1 // pred_fallthru
      _
    // Predicated region
    $region18: #{conv1d_same_pallas.1} parent=1 // pred_check
      _
    $region19: #{conv1d_same_pallas.1} parent=1 // pred_check_branch
      %828 = sbr.rel (0) target = $region21
    $region20: #{conv1d_same_pallas.1} parent=1 // pred_region
      %829 = dma.done [#allocation3], 8704
    $region21: #{conv1d_same_pallas.1} parent=1 // pred_fallthru
      _
    %830 = vsyncpa [#allocation3], 1

</llo_original>
